<compile_context>
chip_gen: v7x
topology: tpu7x:2x2x1
jax: 0.10.0
libtpu: 0.0.40
codegen_flags: <defaults>
</compile_context>

<pallas_src>
import jax
import jax.numpy as jnp
from jax.experimental import pallas as pl
from jax.experimental.pallas import tpu as pltpu

_LANE = 128


def _leaky_relu(x, slope=0.2):
    return jnp.where(x >= 0, x, slope * x)


def vae_kernel(xe_ref,
               we1_ref, be1_ref, we2_ref, be2_ref, wmv_ref, bmv_ref,
               wd1_ref, bd1_ref, wd2_ref, bd2_ref, wd3_ref, bd3_ref,
               out_ref):
    """One batch tile (batch on lanes) of the full VAE forward.

    xe_ref : (Y+Z, tb) f32   rows [0:Y)    = x^T,      rows [Y:Y+Z)  = eps^T
    out_ref: (Y+2Z, tb) f32  rows [0:Y)    = x_hat^T,  rows [Y:Y+2Z) = [mean; log_var]^T
    Weights are PyTorch-layout (out, in), biases (out, 1); all VMEM-resident.
    """
    cdt = we1_ref.dtype            # MXU input dtype for the hidden layers
    y_len = we1_ref.shape[1]       # W_e1: (H, Y)
    z_dim = wd1_ref.shape[1]       # W_d1: (H, Z)

    slab = xe_ref[...]                            # (Y+Z, tb) f32
    x_t = slab[:y_len, :].astype(cdt)             # (Y, tb)
    eps_t = slab[y_len:, :]                       # (Z, tb) f32

    # ---- Encoder:  h^T = W @ x^T + b  (batch on lanes, lane-dense) ----
    h = jnp.dot(we1_ref[...], x_t, preferred_element_type=jnp.float32) + be1_ref[...]
    h = _leaky_relu(h)
    h = jnp.dot(we2_ref[...], h.astype(cdt),
                preferred_element_type=jnp.float32) + be2_ref[...]
    h = _leaky_relu(h)                            # (H, tb) f32

    # ---- Fused [mean ; log_var] head (kept in f32: feeds exp()) ----
    mv = jnp.dot(wmv_ref[...], h, preferred_element_type=jnp.float32) + bmv_ref[...]
    mean = mv[:z_dim, :]
    log_var = mv[z_dim:, :]

    # ---- Reparameterization (f32) ----
    z = mean + jnp.exp(0.5 * log_var) * eps_t     # (Z, tb)

    # ---- Decoder ----
    d = jnp.dot(wd1_ref[...], z.astype(cdt),
                preferred_element_type=jnp.float32) + bd1_ref[...]
    d = _leaky_relu(d)
    d = jnp.dot(wd2_ref[...], d.astype(cdt),
                preferred_element_type=jnp.float32) + bd2_ref[...]
    d = _leaky_relu(d)
    x_hat = jnp.dot(wd3_ref[...], d.astype(cdt),
                    preferred_element_type=jnp.float32) + bd3_ref[...]

    # ---- Single fused, lane-dense output slab (unmasked stores) ----
    out_ref[:y_len, :] = x_hat
    out_ref[y_len:, :] = mv


def prepare_params(params, compute_dtype=jnp.float32):
    """One-time parameter prep, hoisted out of the per-call hot path.

    Fuses FC_mean / FC_var into a single (2Z, H) head and casts the hidden
    layer weights to `compute_dtype`.  The fused head and all biases stay f32
    (the head feeds exp(0.5*log_var)).  Weights stay PyTorch-layout (out, in).
    """
    cdt = jnp.dtype(compute_dtype)
    f32 = jnp.float32
    wmv = jnp.concatenate([params["enc_wm"], params["enc_wv"]], axis=0)   # (2Z, H)
    bmv = jnp.concatenate([params["enc_bm"], params["enc_bv"]], axis=0)   # (2Z, 1)
    weights = [
        params["enc_w1"].astype(cdt), params["enc_b1"].astype(f32),
        params["enc_w2"].astype(cdt), params["enc_b2"].astype(f32),
        wmv.astype(f32), bmv.astype(f32),
        params["dec_w1"].astype(cdt), params["dec_b1"].astype(f32),
        params["dec_w2"].astype(cdt), params["dec_b2"].astype(f32),
        params["dec_w3"].astype(cdt), params["dec_b3"].astype(f32),
    ]
    return {
        "weights": weights,
        "y_length": int(params["enc_w1"].shape[1]),
        "hidden_dim": int(params["enc_w1"].shape[0]),
        "z_dim": int(params["enc_wm"].shape[0]),
    }


def vae_forward(x, eps, prepped, *, batch_tile=2048):
    """x: (B, y_length) f32, eps: (B, z_dim) f32, prepped from prepare_params().
    Returns (x_hat, mean, log_var) in f32."""
    B, Y = x.shape
    Z = eps.shape[-1]
    H = prepped["hidden_dim"]
    assert Y == prepped["y_length"] and Z == prepped["z_dim"]
    weights = prepped["weights"]

    # Batch tiling: lane-dense tiles (multiple of 128); keep >= 2 grid steps
    # when the batch is big enough so v7x's 2 TensorCores both get work.
    tb_max = max(_LANE, (batch_tile // _LANE) * _LANE)
    n_tiles = max(1, pl.cdiv(B, tb_max))
    if n_tiles == 1 and B > 2 * _LANE:
        n_tiles = 2
    tb = max(_LANE, pl.cdiv(pl.cdiv(B, n_tiles), _LANE) * _LANE)
    pb = n_tiles * tb
    grid = (n_tiles,)

    # Fused batch-on-lanes input slab: rows [0:Y)=x^T, rows [Y:Y+Z)=eps^T.
    # (f32 end-to-end in HBM; any bf16 cast happens in-VMEM inside the kernel.)
    xe = jnp.concatenate([x, eps], axis=1).astype(jnp.float32)   # (B, Y+Z)
    if pb != B:
        xe = jnp.pad(xe, ((0, pb - B), (0, 0)))
    xe_t = xe.T                                                  # (Y+Z, pb)

    resident = lambda a: pl.BlockSpec(a.shape, lambda i: (0, 0))  # VMEM-resident
    in_specs = ([pl.BlockSpec((Y + Z, tb), lambda i: (0, i))]
                + [resident(w) for w in weights])
    out_specs = pl.BlockSpec((Y + 2 * Z, tb), lambda i: (0, i))
    out_shape = jax.ShapeDtypeStruct((Y + 2 * Z, pb), jnp.float32)

    # VMEM budget: double-buffered I/O blocks + resident weights + in-kernel
    # intermediates (h/d etc., (H, tb) f32).  Clamped to stay safe on v7x (64 MiB).
    f32b = 4
    in_blk = (Y + Z) * tb * f32b
    out_blk = (Y + 2 * Z) * tb * f32b
    w_bytes = sum(int(w.size) * w.dtype.itemsize for w in weights)
    interm = 8 * H * tb * f32b
    vmem_need = 2 * (2 * (in_blk + out_blk) + 2 * w_bytes + interm)
    vmem_limit = int(min(max(vmem_need, 32 << 20), 48 << 20))

    flops = 2 * pb * (Y * H + H * H + H * 2 * Z + Z * H + H * H + H * Y)
    bytes_accessed = int(xe_t.size * f32b + w_bytes + pb * (Y + 2 * Z) * f32b)
    cost = pl.CostEstimate(flops=int(flops), transcendentals=int(pb * Z),
                           bytes_accessed=bytes_accessed)

    out_t = pl.pallas_call(
        vae_kernel,
        out_shape=out_shape,
        grid=grid,
        in_specs=in_specs,
        out_specs=out_specs,
        compiler_params=pltpu.CompilerParams(
            dimension_semantics=("parallel",),     # batch tiles are independent
            vmem_limit_bytes=vmem_limit,
        ),
        cost_estimate=cost,
    )(xe_t, *weights)

    out = out_t.T[:B]                  # (B, Y+2Z): layout plumbing only
    x_hat = out[:, :Y]
    mean = out[:, Y:Y + Z]
    log_var = out[:, Y + Z:]
    return x_hat, mean, log_var


def init_params(key, y_length, hidden_dim, z_dim):
    """Synthetic PyTorch-style init. Weights in native nn.Linear (out, in) layout."""
    ks = jax.random.split(key, 14)

    def lin(kw, kb, fan_in, fan_out):
        bound = 1.0 / (fan_in ** 0.5)
        w = jax.random.uniform(kw, (fan_out, fan_in), jnp.float32, -bound, bound)
        b = jax.random.uniform(kb, (fan_out, 1), jnp.float32, -bound, bound)
        return w, b

    p = {}
    p["enc_w1"], p["enc_b1"] = lin(ks[0], ks[1], y_length, hidden_dim)
    p["enc_w2"], p["enc_b2"] = lin(ks[2], ks[3], hidden_dim, hidden_dim)
    p["enc_wm"], p["enc_bm"] = lin(ks[4], ks[5], hidden_dim, z_dim)
    p["enc_wv"], p["enc_bv"] = lin(ks[6], ks[7], hidden_dim, z_dim)
    p["dec_w1"], p["dec_b1"] = lin(ks[8], ks[9], z_dim, hidden_dim)
    p["dec_w2"], p["dec_b2"] = lin(ks[10], ks[11], hidden_dim, hidden_dim)
    p["dec_w3"], p["dec_b3"] = lin(ks[12], ks[13], hidden_dim, y_length)
    return p


def vae_ref(x, eps, p):
    """Pure-JAX f32 reference matching the PyTorch VAE.forward."""
    lrelu = lambda v: jnp.where(v >= 0, v, 0.2 * v)
    lin = lambda a, w, b: a @ w.T + b.reshape(1, -1)
    h = lrelu(lin(x, p["enc_w1"], p["enc_b1"]))
    h = lrelu(lin(h, p["enc_w2"], p["enc_b2"]))
    mean = lin(h, p["enc_wm"], p["enc_bm"])
    log_var = lin(h, p["enc_wv"], p["enc_bv"])
    z = mean + jnp.exp(0.5 * log_var) * eps
    d = lrelu(lin(z, p["dec_w1"], p["dec_b1"]))
    d = lrelu(lin(d, p["dec_w2"], p["dec_b2"]))
    x_hat = lin(d, p["dec_w3"], p["dec_b3"])
    return x_hat, mean, log_var


if __name__ == "__main__":
    Y_LENGTH, HIDDEN, Z_DIM = 16, 32, 8
    key = jax.random.PRNGKey(0)
    k_x, k_e, k_p, k_x2, k_e2 = jax.random.split(key, 5)
    params = init_params(k_p, Y_LENGTH, HIDDEN, Z_DIM)

    # One-time parameter prep (head fusion + casts), hoisted out of the hot path.
    prepped = prepare_params(params)                     # f32 compute (v5e-safe)

    # --- small case: B=2, single 128-lane tile ---
    B = 2
    x = jax.random.normal(k_x, (B, Y_LENGTH), jnp.float32)
    # NOTE: torch.randn_like(var) is replaced by an explicit eps input so the
    # forward is deterministic and checkable against the pure-JAX reference.
    eps = jax.random.normal(k_e, (B, Z_DIM), jnp.float32)
    x_hat, mean, log_var = jax.block_until_ready(vae_forward(x, eps, prepped))
    xr, mr, lr = vae_ref(x, eps, params)
    assert x_hat.shape == (B, Y_LENGTH)
    assert mean.shape == (B, Z_DIM) and log_var.shape == (B, Z_DIM)
    assert jnp.allclose(x_hat, xr, atol=1e-4, rtol=1e-4)
    assert jnp.allclose(mean, mr, atol=1e-4, rtol=1e-4)
    assert jnp.allclose(log_var, lr, atol=1e-4, rtol=1e-4)

    # --- larger, non-multiple batch: exercises the 2-tile "parallel" grid + padding ---
    B2 = 300
    x2 = jax.random.normal(k_x2, (B2, Y_LENGTH), jnp.float32)
    eps2 = jax.random.normal(k_e2, (B2, Z_DIM), jnp.float32)
    x_hat2, mean2, log_var2 = jax.block_until_ready(vae_forward(x2, eps2, prepped))
    xr2, mr2, lr2 = vae_ref(x2, eps2, params)
    assert x_hat2.shape == (B2, Y_LENGTH)
    assert jnp.allclose(x_hat2, xr2, atol=1e-4, rtol=1e-4)
    assert jnp.allclose(mean2, mr2, atol=1e-4, rtol=1e-4)
    assert jnp.allclose(log_var2, lr2, atol=1e-4, rtol=1e-4)

    # --- optional bf16 hidden-layer path (v6e/v7x); mv head + reparam stay f32 ---
    prepped_bf16 = prepare_params(params, compute_dtype=jnp.bfloat16)
    x_hat3, mean3, log_var3 = jax.block_until_ready(vae_forward(x2, eps2, prepped_bf16))
    assert jnp.allclose(x_hat3, xr2, atol=1e-1, rtol=1e-1)
    assert jnp.allclose(mean3, mr2, atol=1e-1, rtol=1e-1)

    print("KERNEL_OK")
</pallas_src>

<mosaic_0001>
module attributes {stable_mosaic.version = 11 : i64} {
  func.func @vae_kernel(%arg0: i32, %arg1: memref<24x128xf32, #tpu.memory_space<vmem>>, %arg2: memref<32x16xf32, #tpu.memory_space<vmem>>, %arg3: memref<32x1xf32, #tpu.memory_space<vmem>>, %arg4: memref<32x32xf32, #tpu.memory_space<vmem>>, %arg5: memref<32x1xf32, #tpu.memory_space<vmem>>, %arg6: memref<16x32xf32, #tpu.memory_space<vmem>>, %arg7: memref<16x1xf32, #tpu.memory_space<vmem>>, %arg8: memref<32x8xf32, #tpu.memory_space<vmem>>, %arg9: memref<32x1xf32, #tpu.memory_space<vmem>>, %arg10: memref<32x32xf32, #tpu.memory_space<vmem>>, %arg11: memref<32x1xf32, #tpu.memory_space<vmem>>, %arg12: memref<16x32xf32, #tpu.memory_space<vmem>>, %arg13: memref<16x1xf32, #tpu.memory_space<vmem>>, %arg14: memref<32x128xf32, #tpu.memory_space<vmem>>) attributes {dimension_semantics = [#tpu.dimension_semantics<parallel>], iteration_bounds = array<i64: 1>, scalar_prefetch = 0 : i64, scratch_operands = 0 : i64, tpu.core_type = #tpu.core_type<tc>, window_params = [{transform_indices = @transform_0, window_bounds = array<i64: 24, 128>}, {pipeline_mode = #tpu.pipeline_mode<synchronous>, transform_indices = @transform_1, window_bounds = array<i64: 32, 16>}, {pipeline_mode = #tpu.pipeline_mode<synchronous>, transform_indices = @transform_2, window_bounds = array<i64: 32, 1>}, {pipeline_mode = #tpu.pipeline_mode<synchronous>, transform_indices = @transform_3, window_bounds = array<i64: 32, 32>}, {pipeline_mode = #tpu.pipeline_mode<synchronous>, transform_indices = @transform_4, window_bounds = array<i64: 32, 1>}, {pipeline_mode = #tpu.pipeline_mode<synchronous>, transform_indices = @transform_5, window_bounds = array<i64: 16, 32>}, {pipeline_mode = #tpu.pipeline_mode<synchronous>, transform_indices = @transform_6, window_bounds = array<i64: 16, 1>}, {pipeline_mode = #tpu.pipeline_mode<synchronous>, transform_indices = @transform_7, window_bounds = array<i64: 32, 8>}, {pipeline_mode = #tpu.pipeline_mode<synchronous>, transform_indices = @transform_8, window_bounds = array<i64: 32, 1>}, {pipeline_mode = #tpu.pipeline_mode<synchronous>, transform_indices = @transform_9, window_bounds = array<i64: 32, 32>}, {pipeline_mode = #tpu.pipeline_mode<synchronous>, transform_indices = @transform_10, window_bounds = array<i64: 32, 1>}, {pipeline_mode = #tpu.pipeline_mode<synchronous>, transform_indices = @transform_11, window_bounds = array<i64: 16, 32>}, {pipeline_mode = #tpu.pipeline_mode<synchronous>, transform_indices = @transform_12, window_bounds = array<i64: 16, 1>}, {transform_indices = @transform_13, window_bounds = array<i64: 32, 128>}]} {
    %c0 = arith.constant 0 : index
    %c0_0 = arith.constant 0 : index
    %0 = vector.load %arg1[%c0, %c0_0] : memref<24x128xf32, #tpu.memory_space<vmem>>, vector<24x128xf32>
    %1 = vector.extract_strided_slice %0 {offsets = [0, 0], sizes = [16, 128], strides = [1, 1]} : vector<24x128xf32> to vector<16x128xf32>
    %2 = vector.extract_strided_slice %0 {offsets = [16, 0], sizes = [8, 128], strides = [1, 1]} : vector<24x128xf32> to vector<8x128xf32>
    %c0_1 = arith.constant 0 : index
    %c0_2 = arith.constant 0 : index
    %3 = vector.load %arg2[%c0_1, %c0_2] : memref<32x16xf32, #tpu.memory_space<vmem>>, vector<32x16xf32>
    %cst = arith.constant dense<0.000000e+00> : vector<32x128xf32>
    %4 = tpu.matmul %3, %1, %cst {dimension_numbers = #tpu.dot_dimension_numbers<[1], [0], [0], [1], [0, 0, 1, 1], [], []>} : vector<32x16xf32>, vector<16x128xf32>, vector<32x128xf32> -> vector<32x128xf32>
    %c0_3 = arith.constant 0 : index
    %c0_4 = arith.constant 0 : index
    %5 = vector.load %arg3[%c0_3, %c0_4] : memref<32x1xf32, #tpu.memory_space<vmem>>, vector<32x1xf32>
    %6 = vector.broadcast %5 : vector<32x1xf32> to vector<32x128xf32>
    %7 = arith.addf %4, %6 : vector<32x128xf32>
    %cst_5 = arith.constant 0.000000e+00 : f32
    %8 = vector.broadcast %cst_5 : f32 to vector<32x128xf32>
    %9 = arith.cmpf oge, %7, %8 : vector<32x128xf32>
    %cst_6 = arith.constant 2.000000e-01 : f32
    %10 = vector.broadcast %cst_6 : f32 to vector<32x128xf32>
    %11 = arith.mulf %10, %7 : vector<32x128xf32>
    %12 = arith.select %9, %7, %11 : vector<32x128xi1>, vector<32x128xf32>
    %c0_7 = arith.constant 0 : index
    %c0_8 = arith.constant 0 : index
    %13 = vector.load %arg4[%c0_7, %c0_8] : memref<32x32xf32, #tpu.memory_space<vmem>>, vector<32x32xf32>
    %cst_9 = arith.constant dense<0.000000e+00> : vector<32x128xf32>
    %14 = tpu.matmul %13, %12, %cst_9 {dimension_numbers = #tpu.dot_dimension_numbers<[1], [0], [0], [1], [0, 0, 1, 1], [], []>} : vector<32x32xf32>, vector<32x128xf32>, vector<32x128xf32> -> vector<32x128xf32>
    %c0_10 = arith.constant 0 : index
    %c0_11 = arith.constant 0 : index
    %15 = vector.load %arg5[%c0_10, %c0_11] : memref<32x1xf32, #tpu.memory_space<vmem>>, vector<32x1xf32>
    %16 = vector.broadcast %15 : vector<32x1xf32> to vector<32x128xf32>
    %17 = arith.addf %14, %16 : vector<32x128xf32>
    %cst_12 = arith.constant 0.000000e+00 : f32
    %18 = vector.broadcast %cst_12 : f32 to vector<32x128xf32>
    %19 = arith.cmpf oge, %17, %18 : vector<32x128xf32>
    %cst_13 = arith.constant 2.000000e-01 : f32
    %20 = vector.broadcast %cst_13 : f32 to vector<32x128xf32>
    %21 = arith.mulf %20, %17 : vector<32x128xf32>
    %22 = arith.select %19, %17, %21 : vector<32x128xi1>, vector<32x128xf32>
    %c0_14 = arith.constant 0 : index
    %c0_15 = arith.constant 0 : index
    %23 = vector.load %arg6[%c0_14, %c0_15] : memref<16x32xf32, #tpu.memory_space<vmem>>, vector<16x32xf32>
    %cst_16 = arith.constant dense<0.000000e+00> : vector<16x128xf32>
    %24 = tpu.matmul %23, %22, %cst_16 {dimension_numbers = #tpu.dot_dimension_numbers<[1], [0], [0], [1], [0, 0, 1, 1], [], []>} : vector<16x32xf32>, vector<32x128xf32>, vector<16x128xf32> -> vector<16x128xf32>
    %c0_17 = arith.constant 0 : index
    %c0_18 = arith.constant 0 : index
    %25 = vector.load %arg7[%c0_17, %c0_18] : memref<16x1xf32, #tpu.memory_space<vmem>>, vector<16x1xf32>
    %26 = vector.broadcast %25 : vector<16x1xf32> to vector<16x128xf32>
    %27 = arith.addf %24, %26 : vector<16x128xf32>
    %28 = vector.extract_strided_slice %27 {offsets = [0, 0], sizes = [8, 128], strides = [1, 1]} : vector<16x128xf32> to vector<8x128xf32>
    %29 = vector.extract_strided_slice %27 {offsets = [8, 0], sizes = [8, 128], strides = [1, 1]} : vector<16x128xf32> to vector<8x128xf32>
    %cst_19 = arith.constant 5.000000e-01 : f32
    %30 = vector.broadcast %cst_19 : f32 to vector<8x128xf32>
    %31 = arith.mulf %30, %29 : vector<8x128xf32>
    %32 = math.exp %31 : vector<8x128xf32>
    %33 = arith.mulf %32, %2 : vector<8x128xf32>
    %34 = arith.addf %28, %33 : vector<8x128xf32>
    %c0_20 = arith.constant 0 : index
    %c0_21 = arith.constant 0 : index
    %35 = vector.load %arg8[%c0_20, %c0_21] : memref<32x8xf32, #tpu.memory_space<vmem>>, vector<32x8xf32>
    %cst_22 = arith.constant dense<0.000000e+00> : vector<32x128xf32>
    %36 = tpu.matmul %35, %34, %cst_22 {dimension_numbers = #tpu.dot_dimension_numbers<[1], [0], [0], [1], [0, 0, 1, 1], [], []>} : vector<32x8xf32>, vector<8x128xf32>, vector<32x128xf32> -> vector<32x128xf32>
    %c0_23 = arith.constant 0 : index
    %c0_24 = arith.constant 0 : index
    %37 = vector.load %arg9[%c0_23, %c0_24] : memref<32x1xf32, #tpu.memory_space<vmem>>, vector<32x1xf32>
    %38 = vector.broadcast %37 : vector<32x1xf32> to vector<32x128xf32>
    %39 = arith.addf %36, %38 : vector<32x128xf32>
    %cst_25 = arith.constant 0.000000e+00 : f32
    %40 = vector.broadcast %cst_25 : f32 to vector<32x128xf32>
    %41 = arith.cmpf oge, %39, %40 : vector<32x128xf32>
    %cst_26 = arith.constant 2.000000e-01 : f32
    %42 = vector.broadcast %cst_26 : f32 to vector<32x128xf32>
    %43 = arith.mulf %42, %39 : vector<32x128xf32>
    %44 = arith.select %41, %39, %43 : vector<32x128xi1>, vector<32x128xf32>
    %c0_27 = arith.constant 0 : index
    %c0_28 = arith.constant 0 : index
    %45 = vector.load %arg10[%c0_27, %c0_28] : memref<32x32xf32, #tpu.memory_space<vmem>>, vector<32x32xf32>
    %cst_29 = arith.constant dense<0.000000e+00> : vector<32x128xf32>
    %46 = tpu.matmul %45, %44, %cst_29 {dimension_numbers = #tpu.dot_dimension_numbers<[1], [0], [0], [1], [0, 0, 1, 1], [], []>} : vector<32x32xf32>, vector<32x128xf32>, vector<32x128xf32> -> vector<32x128xf32>
    %c0_30 = arith.constant 0 : index
    %c0_31 = arith.constant 0 : index
    %47 = vector.load %arg11[%c0_30, %c0_31] : memref<32x1xf32, #tpu.memory_space<vmem>>, vector<32x1xf32>
    %48 = vector.broadcast %47 : vector<32x1xf32> to vector<32x128xf32>
    %49 = arith.addf %46, %48 : vector<32x128xf32>
    %cst_32 = arith.constant 0.000000e+00 : f32
    %50 = vector.broadcast %cst_32 : f32 to vector<32x128xf32>
    %51 = arith.cmpf oge, %49, %50 : vector<32x128xf32>
    %cst_33 = arith.constant 2.000000e-01 : f32
    %52 = vector.broadcast %cst_33 : f32 to vector<32x128xf32>
    %53 = arith.mulf %52, %49 : vector<32x128xf32>
    %54 = arith.select %51, %49, %53 : vector<32x128xi1>, vector<32x128xf32>
    %c0_34 = arith.constant 0 : index
    %c0_35 = arith.constant 0 : index
    %55 = vector.load %arg12[%c0_34, %c0_35] : memref<16x32xf32, #tpu.memory_space<vmem>>, vector<16x32xf32>
    %cst_36 = arith.constant dense<0.000000e+00> : vector<16x128xf32>
    %56 = tpu.matmul %55, %54, %cst_36 {dimension_numbers = #tpu.dot_dimension_numbers<[1], [0], [0], [1], [0, 0, 1, 1], [], []>} : vector<16x32xf32>, vector<32x128xf32>, vector<16x128xf32> -> vector<16x128xf32>
    %c0_37 = arith.constant 0 : index
    %c0_38 = arith.constant 0 : index
    %57 = vector.load %arg13[%c0_37, %c0_38] : memref<16x1xf32, #tpu.memory_space<vmem>>, vector<16x1xf32>
    %58 = vector.broadcast %57 : vector<16x1xf32> to vector<16x128xf32>
    %59 = arith.addf %56, %58 : vector<16x128xf32>
    %c0_39 = arith.constant 0 : index
    %c0_40 = arith.constant 0 : index
    %60 = vector.load %arg14[%c0_39, %c0_40] : memref<32x128xf32, #tpu.memory_space<vmem>>, vector<16x128xf32>
    tpu.vector_store %arg14[%c0_39, %c0_40], %59 {strides = array<i32>} : memref<32x128xf32, #tpu.memory_space<vmem>>, vector<16x128xf32>,
    %c16 = arith.constant 16 : index
    %c0_41 = arith.constant 0 : index
    %61 = vector.load %arg14[%c16, %c0_41] : memref<32x128xf32, #tpu.memory_space<vmem>>, vector<16x128xf32>
    tpu.vector_store %arg14[%c16, %c0_41], %27 {strides = array<i32>} : memref<32x128xf32, #tpu.memory_space<vmem>>, vector<16x128xf32>,
    return
  }
  func.func @transform_0(%arg0: i32) -> (i32, i32) {
    %c0_i32 = arith.constant 0 : i32
    %c0_i32_0 = arith.constant 0 : i32
    return %c0_i32, %arg0 : i32, i32
  }
  func.func @transform_1(%arg0: i32) -> (i32, i32) {
    %c0_i32 = arith.constant 0 : i32
    %c0_i32_0 = arith.constant 0 : i32
    %c0_i32_1 = arith.constant 0 : i32
    return %c0_i32, %c0_i32_0 : i32, i32
  }
  func.func @transform_2(%arg0: i32) -> (i32, i32) {
    %c0_i32 = arith.constant 0 : i32
    %c0_i32_0 = arith.constant 0 : i32
    %c0_i32_1 = arith.constant 0 : i32
    return %c0_i32, %c0_i32_0 : i32, i32
  }
  func.func @transform_3(%arg0: i32) -> (i32, i32) {
    %c0_i32 = arith.constant 0 : i32
    %c0_i32_0 = arith.constant 0 : i32
    %c0_i32_1 = arith.constant 0 : i32
    return %c0_i32, %c0_i32_0 : i32, i32
  }
  func.func @transform_4(%arg0: i32) -> (i32, i32) {
    %c0_i32 = arith.constant 0 : i32
    %c0_i32_0 = arith.constant 0 : i32
    %c0_i32_1 = arith.constant 0 : i32
    return %c0_i32, %c0_i32_0 : i32, i32
  }
  func.func @transform_5(%arg0: i32) -> (i32, i32) {
    %c0_i32 = arith.constant 0 : i32
    %c0_i32_0 = arith.constant 0 : i32
    %c0_i32_1 = arith.constant 0 : i32
    return %c0_i32, %c0_i32_0 : i32, i32
  }
  func.func @transform_6(%arg0: i32) -> (i32, i32) {
    %c0_i32 = arith.constant 0 : i32
    %c0_i32_0 = arith.constant 0 : i32
    %c0_i32_1 = arith.constant 0 : i32
    return %c0_i32, %c0_i32_0 : i32, i32
  }
  func.func @transform_7(%arg0: i32) -> (i32, i32) {
    %c0_i32 = arith.constant 0 : i32
    %c0_i32_0 = arith.constant 0 : i32
    %c0_i32_1 = arith.constant 0 : i32
    return %c0_i32, %c0_i32_0 : i32, i32
  }
  func.func @transform_8(%arg0: i32) -> (i32, i32) {
    %c0_i32 = arith.constant 0 : i32
    %c0_i32_0 = arith.constant 0 : i32
    %c0_i32_1 = arith.constant 0 : i32
    return %c0_i32, %c0_i32_0 : i32, i32
  }
  func.func @transform_9(%arg0: i32) -> (i32, i32) {
    %c0_i32 = arith.constant 0 : i32
    %c0_i32_0 = arith.constant 0 : i32
    %c0_i32_1 = arith.constant 0 : i32
    return %c0_i32, %c0_i32_0 : i32, i32
  }
  func.func @transform_10(%arg0: i32) -> (i32, i32) {
    %c0_i32 = arith.constant 0 : i32
    %c0_i32_0 = arith.constant 0 : i32
    %c0_i32_1 = arith.constant 0 : i32
    return %c0_i32, %c0_i32_0 : i32, i32
  }
  func.func @transform_11(%arg0: i32) -> (i32, i32) {
    %c0_i32 = arith.constant 0 : i32
    %c0_i32_0 = arith.constant 0 : i32
    %c0_i32_1 = arith.constant 0 : i32
    return %c0_i32, %c0_i32_0 : i32, i32
  }
  func.func @transform_12(%arg0: i32) -> (i32, i32) {
    %c0_i32 = arith.constant 0 : i32
    %c0_i32_0 = arith.constant 0 : i32
    %c0_i32_1 = arith.constant 0 : i32
    return %c0_i32, %c0_i32_0 : i32, i32
  }
  func.func @transform_13(%arg0: i32) -> (i32, i32) {
    %c0_i32 = arith.constant 0 : i32
    %c0_i32_0 = arith.constant 0 : i32
    return %c0_i32, %arg0 : i32, i32
  }
}

</mosaic_0001>

<llo_original>
// kernel: tpu_custom_call.1
$region0: #{tpu_custom_call.1}
  #allocation0 [shape = 'u32[]', space=smem, size = 0x4, offset = 0x4, fixed_abs, tag = 'smem constant byte address 0x4 - core index']
  #allocation1 [shape = 'u32[144,128]{1,0:T(1,128)}', space=vmem, size = 0x12000, scoped, tag = 'internal scratch']
  %s0 = inlined_call_operand.vmem [shape: f32[24,128], index: 0, kind: input, shape index: {}]
  %s1 = inlined_call_operand.vmem [shape: f32[32,16], index: 1, kind: input, shape index: {}]
  %s2 = inlined_call_operand.vmem [shape: f32[32,1], index: 2, kind: input, shape index: {}]
  %s3 = inlined_call_operand.vmem [shape: f32[32,32], index: 3, kind: input, shape index: {}]
  %s4 = inlined_call_operand.vmem [shape: f32[32,1], index: 4, kind: input, shape index: {}]
  %s5 = inlined_call_operand.vmem [shape: f32[16,32], index: 5, kind: input, shape index: {}]
  %s6 = inlined_call_operand.vmem [shape: f32[16,1], index: 6, kind: input, shape index: {}]
  %s7 = inlined_call_operand.vmem [shape: f32[32,8], index: 7, kind: input, shape index: {}]
  %s8 = inlined_call_operand.vmem [shape: f32[32,1], index: 8, kind: input, shape index: {}]
  %s9 = inlined_call_operand.vmem [shape: f32[32,32], index: 9, kind: input, shape index: {}]
  %s10 = inlined_call_operand.vmem [shape: f32[32,1], index: 10, kind: input, shape index: {}]
  %s11 = inlined_call_operand.vmem [shape: f32[16,32], index: 11, kind: input, shape index: {}]
  %s12 = inlined_call_operand.vmem [shape: f32[16,1], index: 12, kind: input, shape index: {}]
  %s13 = inlined_call_operand.hbm [shape: f32[32,128], index: 13, kind: output, shape index: {}]
  %s14 = sld [smem:[#allocation0]]
  $region62: #{tpu_custom_call.1} parent=0
    _
  %s16 = ssub.s32 1, %s14
  %s17 = scalar_select 0, %s16, %s14
  $region1: #{tpu_custom_call.1} parent=0
    #allocation2 [shape = 'u8[16384]{0}', space=vmem, size = 0x4000, scoped, tag = 'output window, operand 0, single buffered']
    #allocation3 [shape = 's32[1]{0}', space=sflag, size = 0x4, scoped, tag = 'scoped memory for tpu_custom_call.1']
    %18 = vsyncpa [#allocation3], 0
    // Predicated region
    $region2: #{tpu_custom_call.1} parent=1 // pred_check
      _
    $region3: #{tpu_custom_call.1} parent=1 // pred_check_branch
      %20 = sbr.rel (0) target = $region5
    $region4: #{tpu_custom_call.1} parent=1 // pred_region
      _
    $region5: #{tpu_custom_call.1} parent=1 // pred_fallthru
      _
    // Predicated region
    $region6: #{tpu_custom_call.1} parent=1 // pred_check
      _
    $region7: #{tpu_custom_call.1} parent=1 // pred_check_branch
      %22 = sbr.rel (0) target = $region9
    $region8: #{tpu_custom_call.1} parent=1 // pred_region
      _
    $region9: #{tpu_custom_call.1} parent=1 // pred_fallthru
      _
    // Predicated region
    $region10: #{tpu_custom_call.1} parent=1 // pred_check
      _
    $region11: #{tpu_custom_call.1} parent=1 // pred_check_branch
      %24 = sbr.rel (0) target = $region13
    $region12: #{tpu_custom_call.1} parent=1 // pred_region
      _
    $region13: #{tpu_custom_call.1} parent=1 // pred_fallthru
      _
    // Predicated region
    $region14: #{tpu_custom_call.1} parent=1 // pred_check
      _
    $region15: #{tpu_custom_call.1} parent=1 // pred_check_branch
      %26 = sbr.rel (0) target = $region17
    $region16: #{tpu_custom_call.1} parent=1 // pred_region
      _
    $region17: #{tpu_custom_call.1} parent=1 // pred_fallthru
      _
    // Predicated region
    $region18: #{tpu_custom_call.1} parent=1 // pred_check
      _
    $region19: #{tpu_custom_call.1} parent=1 // pred_check_branch
      %28 = sbr.rel (0) target = $region21
    $region20: #{tpu_custom_call.1} parent=1 // pred_region
      _
    $region21: #{tpu_custom_call.1} parent=1 // pred_fallthru
      _
    // Predicated region
    $region22: #{tpu_custom_call.1} parent=1 // pred_check
      _
    $region23: #{tpu_custom_call.1} parent=1 // pred_check_branch
      %30 = sbr.rel (0) target = $region25
    $region24: #{tpu_custom_call.1} parent=1 // pred_region
      _
    $region25: #{tpu_custom_call.1} parent=1 // pred_fallthru
      _
    // Predicated region
    $region26: #{tpu_custom_call.1} parent=1 // pred_check
      _
    $region27: #{tpu_custom_call.1} parent=1 // pred_check_branch
      %32 = sbr.rel (0) target = $region29
    $region28: #{tpu_custom_call.1} parent=1 // pred_region
      _
    $region29: #{tpu_custom_call.1} parent=1 // pred_fallthru
      _
    // Predicated region
    $region30: #{tpu_custom_call.1} parent=1 // pred_check
      _
    $region31: #{tpu_custom_call.1} parent=1 // pred_check_branch
      %34 = sbr.rel (0) target = $region33
    $region32: #{tpu_custom_call.1} parent=1 // pred_region
      _
    $region33: #{tpu_custom_call.1} parent=1 // pred_fallthru
      _
    // Predicated region
    $region34: #{tpu_custom_call.1} parent=1 // pred_check
      _
    $region35: #{tpu_custom_call.1} parent=1 // pred_check_branch
      %36 = sbr.rel (0) target = $region37
    $region36: #{tpu_custom_call.1} parent=1 // pred_region
      _
    $region37: #{tpu_custom_call.1} parent=1 // pred_fallthru
      _
    // Predicated region
    $region38: #{tpu_custom_call.1} parent=1 // pred_check
      _
    $region39: #{tpu_custom_call.1} parent=1 // pred_check_branch
      %38 = sbr.rel (0) target = $region41
    $region40: #{tpu_custom_call.1} parent=1 // pred_region
      _
    $region41: #{tpu_custom_call.1} parent=1 // pred_fallthru
      _
    // Predicated region
    $region42: #{tpu_custom_call.1} parent=1 // pred_check
      _
    $region43: #{tpu_custom_call.1} parent=1 // pred_check_branch
      %40 = sbr.rel (0) target = $region45
    $region44: #{tpu_custom_call.1} parent=1 // pred_region
      _
    $region45: #{tpu_custom_call.1} parent=1 // pred_fallthru
      _
    // Predicated region
    $region46: #{tpu_custom_call.1} parent=1 // pred_check
      _
    $region47: #{tpu_custom_call.1} parent=1 // pred_check_branch
      %42 = sbr.rel (0) target = $region49
    $region48: #{tpu_custom_call.1} parent=1 // pred_region
      _
    $region49: #{tpu_custom_call.1} parent=1 // pred_fallthru
      _
    // Predicated region
    $region50: #{tpu_custom_call.1} parent=1 // pred_check
      _
    $region51: #{tpu_custom_call.1} parent=1 // pred_check_branch
      %44 = sbr.rel (0) target = $region53
    $region52: #{tpu_custom_call.1} parent=1 // pred_region
      _
    $region53: #{tpu_custom_call.1} parent=1 // pred_fallthru
      _
    %v45 = vld [vmem:[%s0] sm:$0xff]
    %v46 = vld [vmem:[%s0 + $0x8] sm:$0xff]
    %v47 = vld [vmem:[%s0 + $0x10] sm:$0xff]
    %v48 = vld [vmem:[%s1] sm:$0xff]
    %v49 = vld [vmem:[%s1 + $0x8] sm:$0xff]
    %v50 = vld [vmem:[%s1 + $0x10] sm:$0xff]
    %v51 = vld [vmem:[%s1 + $0x18] sm:$0xff]
    %v52 = vld [vmem:[%s2] sm:$0xff]
    %v53 = vld [vmem:[%s2 + $0x8] sm:$0xff]
    %v54 = vld [vmem:[%s2 + $0x10] sm:$0xff]
    %v55 = vld [vmem:[%s2 + $0x18] sm:$0xff]
    %57 = vset.pattern.permute.xlu0 0
    %58 = vperm.xlu0 %57, %v52
    %v59 = vpop.permute.xlu0 %58
    %62 = vset.pattern.permute.xlu0 0
    %63 = vperm.xlu0 %62, %v53
    %v64 = vpop.permute.xlu0 %63
    %67 = vset.pattern.permute.xlu0 0
    %68 = vperm.xlu0 %67, %v54
    %v69 = vpop.permute.xlu0 %68
    %72 = vset.pattern.permute.xlu0 0
    %73 = vperm.xlu0 %72, %v55
    %v74 = vpop.permute.xlu0 %73
    %vm76 = vcmask 130048
    %v78 = vsel %vm76, %v48, 0
    %v81 = vsel %vm76, %v49, 0
    %v84 = vsel %vm76, %v50, 0
    %v87 = vsel %vm76, %v51, 0
    %89 = vmatprep.subr.mxu0 0.0
    %90 = vmatpush1.msra.mxu0 %v45
    %91 = vmatprep.subr.mxu0 0.0
    %92 = vmatpush1.msra.mxu0 %v46
    %93 = vmatprep.subr.mxu0 0.0
    %94 = vmatpush1.msra.mxu0 0.0
    %95 = vmatprep.subr.mxu0 0.0
    %96 = vmatpush1.msra.mxu0 0.0
    %97 = vmatprep.subr.mxu0 0.0
    %98 = vmatpush1.msra.mxu0 0.0
    %99 = vmatprep.subr.mxu0 0.0
    %100 = vmatpush1.msra.mxu0 0.0
    %101 = vmatprep.subr.mxu0 0.0
    %102 = vmatpush1.msra.mxu0 0.0
    %103 = vmatprep.subr.mxu0 0.0
    %104 = vmatpush1.msra.mxu0 0.0
    %105 = vmatprep.subr.mxu0 0.0
    %106 = vmatpush1.msra.mxu0 0.0
    %107 = vmatprep.subr.mxu0 0.0
    %108 = vmatpush1.msra.mxu0 0.0
    %109 = vmatprep.subr.mxu0 0.0
    %110 = vmatpush1.msra.mxu0 0.0
    %111 = vmatprep.subr.mxu0 0.0
    %112 = vmatpush1.msra.mxu0 0.0
    %113 = vmatprep.subr.mxu0 0.0
    %114 = vmatpush1.msra.mxu0 0.0
    %115 = vmatprep.subr.mxu0 0.0
    %116 = vmatpush1.msra.mxu0 0.0
    %117 = vmatprep.subr.mxu0 0.0
    %118 = vmatpush1.msra.mxu0 0.0
    %119 = vmatprep.subr.mxu0 0.0
    %120 = vmatpush1.msra.mxu0 0.0
    %121 = vmatprep.subr.mxu0 0.0
    %122 = vmatpush1.msra.mxu0 0.0
    %123 = vmatprep.subr.mxu0 0.0
    %124 = vmatpush1.msra.mxu0 0.0
    %125 = vmatprep.subr.mxu0 0.0
    %126 = vmatpush1.msra.mxu0 0.0
    %127 = vmatprep.subr.mxu0 0.0
    %128 = vmatpush1.msra.mxu0 0.0
    %129 = vmatprep.subr.mxu0 0.0
    %130 = vmatpush1.msra.mxu0 0.0
    %131 = vmatprep.subr.mxu0 0.0
    %132 = vmatpush1.msra.mxu0 0.0
    %133 = vmatprep.subr.mxu0 0.0
    %134 = vmatpush1.msra.mxu0 0.0
    %135 = vmatprep.subr.mxu0 0.0
    %136 = vmatpush1.msra.mxu0 0.0
    %137 = vmatprep.subr.mxu0 0.0
    %138 = vmatpush1.msra.mxu0 0.0
    %139 = vmatprep.subr.mxu0 0.0
    %140 = vmatpush1.msra.mxu0 0.0
    %141 = vmatprep.subr.mxu0 0.0
    %142 = vmatpush1.msra.mxu0 0.0
    %143 = vmatprep.subr.mxu0 0.0
    %144 = vmatpush1.msra.mxu0 0.0
    %145 = vmatprep.subr.mxu0 0.0
    %146 = vmatpush1.msra.mxu0 0.0
    %147 = vmatprep.subr.mxu0 0.0
    %148 = vmatpush1.msra.mxu0 0.0
    %149 = vmatprep.subr.mxu0 0.0
    %150 = vmatpush1.msra.mxu0 0.0
    %151 = vmatprep.subr.mxu0 0.0
    %152 = vmatpush1.msra.mxu0 0.0
    %153 = vmatprep.mubr.f32.mxu0 0.0
    %154 = vmatmul.mubr.f32.gmra.mrb[0].mxu0 %v78
    %v155 = vpop.f32.mrb[0].mxu0
    %v156 = vadd.f32 %v59, %v155
    %v157 = vpop.f32.mrb[0].mxu0
    %158 = vmatprep.mubr.f32.mxu0 0.0
    %159 = vmatmul.mubr.f32.gmra.mrb[0].mxu0 %v81
    %v160 = vpop.f32.mrb[0].mxu0
    %v161 = vadd.f32 %v64, %v160
    %v162 = vpop.f32.mrb[0].mxu0
    %163 = vmatprep.mubr.f32.mxu0 0.0
    %164 = vmatmul.mubr.f32.gmra.mrb[0].mxu0 %v84
    %v165 = vpop.f32.mrb[0].mxu0
    %v166 = vadd.f32 %v69, %v165
    %v167 = vpop.f32.mrb[0].mxu0
    %168 = vmatprep.mubr.f32.mxu0 0.0
    %169 = vmatmul.mubr.f32.gmra.mrb[0].mxu0 %v87
    %v170 = vpop.f32.mrb[0].mxu0
    %v171 = vadd.f32 %v74, %v170
    %v172 = vpop.f32.mrb[0].mxu0
    %173 = vdwg.mxu0
    %vm174 = vcmp.ge.f32.partialorder %v156, 0.0
    %vm175 = vcmp.ge.f32.partialorder %v161, 0.0
    %vm176 = vcmp.ge.f32.partialorder %v166, 0.0
    %vm177 = vcmp.ge.f32.partialorder %v171, 0.0
    %v178 = vmul.f32 %v156, 0.2
    %v179 = vmul.f32 %v161, 0.2
    %v180 = vmul.f32 %v166, 0.2
    %v181 = vmul.f32 %v171, 0.2
    %v182 = vsel %vm174, %v156, %v178
    %v183 = vsel %vm175, %v161, %v179
    %v184 = vsel %vm176, %v166, %v180
    %v185 = vsel %vm177, %v171, %v181
    %v186 = vld [vmem:[%s3] sm:$0xff]
    %v187 = vld [vmem:[%s3 + $0x8] sm:$0xff]
    %v188 = vld [vmem:[%s3 + $0x10] sm:$0xff]
    %v189 = vld [vmem:[%s3 + $0x18] sm:$0xff]
    %v190 = vld [vmem:[%s4] sm:$0xff]
    %v191 = vld [vmem:[%s4 + $0x8] sm:$0xff]
    %v192 = vld [vmem:[%s4 + $0x10] sm:$0xff]
    %v193 = vld [vmem:[%s4 + $0x18] sm:$0xff]
    %195 = vset.pattern.permute.xlu0 0
    %196 = vperm.xlu0 %195, %v190
    %v197 = vpop.permute.xlu0 %196
    %200 = vset.pattern.permute.xlu0 0
    %201 = vperm.xlu0 %200, %v191
    %v202 = vpop.permute.xlu0 %201
    %205 = vset.pattern.permute.xlu0 0
    %206 = vperm.xlu0 %205, %v192
    %v207 = vpop.permute.xlu0 %206
    %210 = vset.pattern.permute.xlu0 0
    %211 = vperm.xlu0 %210, %v193
    %v212 = vpop.permute.xlu0 %211
    %vm214 = vcmask 261120
    %v216 = vsel %vm214, %v186, 0
    %v219 = vsel %vm214, %v187, 0
    %v222 = vsel %vm214, %v188, 0
    %v225 = vsel %vm214, %v189, 0
    %227 = vmatprep.subr.mxu0 0.0
    %228 = vmatpush1.msra.mxu0 %v182
    %229 = vmatprep.subr.mxu0 0.0
    %230 = vmatpush1.msra.mxu0 %v183
    %231 = vmatprep.subr.mxu0 0.0
    %232 = vmatpush1.msra.mxu0 %v184
    %233 = vmatprep.subr.mxu0 0.0
    %234 = vmatpush1.msra.mxu0 %v185
    %235 = vmatprep.subr.mxu0 0.0
    %236 = vmatpush1.msra.mxu0 0.0
    %237 = vmatprep.subr.mxu0 0.0
    %238 = vmatpush1.msra.mxu0 0.0
    %239 = vmatprep.subr.mxu0 0.0
    %240 = vmatpush1.msra.mxu0 0.0
    %241 = vmatprep.subr.mxu0 0.0
    %242 = vmatpush1.msra.mxu0 0.0
    %243 = vmatprep.subr.mxu0 0.0
    %244 = vmatpush1.msra.mxu0 0.0
    %245 = vmatprep.subr.mxu0 0.0
    %246 = vmatpush1.msra.mxu0 0.0
    %247 = vmatprep.subr.mxu0 0.0
    %248 = vmatpush1.msra.mxu0 0.0
    %249 = vmatprep.subr.mxu0 0.0
    %250 = vmatpush1.msra.mxu0 0.0
    %251 = vmatprep.subr.mxu0 0.0
    %252 = vmatpush1.msra.mxu0 0.0
    %253 = vmatprep.subr.mxu0 0.0
    %254 = vmatpush1.msra.mxu0 0.0
    %255 = vmatprep.subr.mxu0 0.0
    %256 = vmatpush1.msra.mxu0 0.0
    %257 = vmatprep.subr.mxu0 0.0
    %258 = vmatpush1.msra.mxu0 0.0
    %259 = vmatprep.subr.mxu0 0.0
    %260 = vmatpush1.msra.mxu0 0.0
    %261 = vmatprep.subr.mxu0 0.0
    %262 = vmatpush1.msra.mxu0 0.0
    %263 = vmatprep.subr.mxu0 0.0
    %264 = vmatpush1.msra.mxu0 0.0
    %265 = vmatprep.subr.mxu0 0.0
    %266 = vmatpush1.msra.mxu0 0.0
    %267 = vmatprep.subr.mxu0 0.0
    %268 = vmatpush1.msra.mxu0 0.0
    %269 = vmatprep.subr.mxu0 0.0
    %270 = vmatpush1.msra.mxu0 0.0
    %271 = vmatprep.subr.mxu0 0.0
    %272 = vmatpush1.msra.mxu0 0.0
    %273 = vmatprep.subr.mxu0 0.0
    %274 = vmatpush1.msra.mxu0 0.0
    %275 = vmatprep.subr.mxu0 0.0
    %276 = vmatpush1.msra.mxu0 0.0
    %277 = vmatprep.subr.mxu0 0.0
    %278 = vmatpush1.msra.mxu0 0.0
    %279 = vmatprep.subr.mxu0 0.0
    %280 = vmatpush1.msra.mxu0 0.0
    %281 = vmatprep.subr.mxu0 0.0
    %282 = vmatpush1.msra.mxu0 0.0
    %283 = vmatprep.subr.mxu0 0.0
    %284 = vmatpush1.msra.mxu0 0.0
    %285 = vmatprep.subr.mxu0 0.0
    %286 = vmatpush1.msra.mxu0 0.0
    %287 = vmatprep.subr.mxu0 0.0
    %288 = vmatpush1.msra.mxu0 0.0
    %289 = vmatprep.subr.mxu0 0.0
    %290 = vmatpush1.msra.mxu0 0.0
    %291 = vmatprep.mubr.f32.mxu0 0.0
    %292 = vmatmul.mubr.f32.gmra.mrb[0].mxu0 %v216
    %v293 = vpop.f32.mrb[0].mxu0
    %v294 = vadd.f32 %v197, %v293
    %v295 = vpop.f32.mrb[0].mxu0
    %296 = vmatprep.mubr.f32.mxu0 0.0
    %297 = vmatmul.mubr.f32.gmra.mrb[0].mxu0 %v219
    %v298 = vpop.f32.mrb[0].mxu0
    %v299 = vadd.f32 %v202, %v298
    %v300 = vpop.f32.mrb[0].mxu0
    %301 = vmatprep.mubr.f32.mxu0 0.0
    %302 = vmatmul.mubr.f32.gmra.mrb[0].mxu0 %v222
    %v303 = vpop.f32.mrb[0].mxu0
    %v304 = vadd.f32 %v207, %v303
    %v305 = vpop.f32.mrb[0].mxu0
    %306 = vmatprep.mubr.f32.mxu0 0.0
    %307 = vmatmul.mubr.f32.gmra.mrb[0].mxu0 %v225
    %v308 = vpop.f32.mrb[0].mxu0
    %v309 = vadd.f32 %v212, %v308
    %v310 = vpop.f32.mrb[0].mxu0
    %311 = vdwg.mxu0
    %vm312 = vcmp.ge.f32.partialorder %v294, 0.0
    %vm313 = vcmp.ge.f32.partialorder %v299, 0.0
    %vm314 = vcmp.ge.f32.partialorder %v304, 0.0
    %vm315 = vcmp.ge.f32.partialorder %v309, 0.0
    %v316 = vmul.f32 %v294, 0.2
    %v317 = vmul.f32 %v299, 0.2
    %v318 = vmul.f32 %v304, 0.2
    %v319 = vmul.f32 %v309, 0.2
    %v320 = vsel %vm312, %v294, %v316
    %v321 = vsel %vm313, %v299, %v317
    %v322 = vsel %vm314, %v304, %v318
    %v323 = vsel %vm315, %v309, %v319
    %v324 = vld [vmem:[%s5] sm:$0xff]
    %v325 = vld [vmem:[%s5 + $0x8] sm:$0xff]
    %v326 = vld [vmem:[%s6] sm:$0xff]
    %v327 = vld [vmem:[%s6 + $0x8] sm:$0xff]
    %329 = vset.pattern.permute.xlu0 0
    %330 = vperm.xlu0 %329, %v326
    %v331 = vpop.permute.xlu0 %330
    %334 = vset.pattern.permute.xlu0 0
    %335 = vperm.xlu0 %334, %v327
    %v336 = vpop.permute.xlu0 %335
    %v339 = vsel %vm214, %v324, 0
    %v342 = vsel %vm214, %v325, 0
    %344 = vmatprep.subr.mxu0 0.0
    %345 = vmatpush1.msra.mxu0 %v320
    %346 = vmatprep.subr.mxu0 0.0
    %347 = vmatpush1.msra.mxu0 %v321
    %348 = vmatprep.subr.mxu0 0.0
    %349 = vmatpush1.msra.mxu0 %v322
    %350 = vmatprep.subr.mxu0 0.0
    %351 = vmatpush1.msra.mxu0 %v323
    %352 = vmatprep.subr.mxu0 0.0
    %353 = vmatpush1.msra.mxu0 0.0
    %354 = vmatprep.subr.mxu0 0.0
    %355 = vmatpush1.msra.mxu0 0.0
    %356 = vmatprep.subr.mxu0 0.0
    %357 = vmatpush1.msra.mxu0 0.0
    %358 = vmatprep.subr.mxu0 0.0
    %359 = vmatpush1.msra.mxu0 0.0
    %360 = vmatprep.subr.mxu0 0.0
    %361 = vmatpush1.msra.mxu0 0.0
    %362 = vmatprep.subr.mxu0 0.0
    %363 = vmatpush1.msra.mxu0 0.0
    %364 = vmatprep.subr.mxu0 0.0
    %365 = vmatpush1.msra.mxu0 0.0
    %366 = vmatprep.subr.mxu0 0.0
    %367 = vmatpush1.msra.mxu0 0.0
    %368 = vmatprep.subr.mxu0 0.0
    %369 = vmatpush1.msra.mxu0 0.0
    %370 = vmatprep.subr.mxu0 0.0
    %371 = vmatpush1.msra.mxu0 0.0
    %372 = vmatprep.subr.mxu0 0.0
    %373 = vmatpush1.msra.mxu0 0.0
    %374 = vmatprep.subr.mxu0 0.0
    %375 = vmatpush1.msra.mxu0 0.0
    %376 = vmatprep.subr.mxu0 0.0
    %377 = vmatpush1.msra.mxu0 0.0
    %378 = vmatprep.subr.mxu0 0.0
    %379 = vmatpush1.msra.mxu0 0.0
    %380 = vmatprep.subr.mxu0 0.0
    %381 = vmatpush1.msra.mxu0 0.0
    %382 = vmatprep.subr.mxu0 0.0
    %383 = vmatpush1.msra.mxu0 0.0
    %384 = vmatprep.subr.mxu0 0.0
    %385 = vmatpush1.msra.mxu0 0.0
    %386 = vmatprep.subr.mxu0 0.0
    %387 = vmatpush1.msra.mxu0 0.0
    %388 = vmatprep.subr.mxu0 0.0
    %389 = vmatpush1.msra.mxu0 0.0
    %390 = vmatprep.subr.mxu0 0.0
    %391 = vmatpush1.msra.mxu0 0.0
    %392 = vmatprep.subr.mxu0 0.0
    %393 = vmatpush1.msra.mxu0 0.0
    %394 = vmatprep.subr.mxu0 0.0
    %395 = vmatpush1.msra.mxu0 0.0
    %396 = vmatprep.subr.mxu0 0.0
    %397 = vmatpush1.msra.mxu0 0.0
    %398 = vmatprep.subr.mxu0 0.0
    %399 = vmatpush1.msra.mxu0 0.0
    %400 = vmatprep.subr.mxu0 0.0
    %401 = vmatpush1.msra.mxu0 0.0
    %402 = vmatprep.subr.mxu0 0.0
    %403 = vmatpush1.msra.mxu0 0.0
    %404 = vmatprep.subr.mxu0 0.0
    %405 = vmatpush1.msra.mxu0 0.0
    %406 = vmatprep.subr.mxu0 0.0
    %407 = vmatpush1.msra.mxu0 0.0
    %408 = vmatprep.mubr.f32.mxu0 0.0
    %409 = vmatmul.mubr.f32.gmra.mrb[0].mxu0 %v339
    %v410 = vpop.f32.mrb[0].mxu0
    %v411 = vadd.f32 %v331, %v410
    %v412 = vpop.f32.mrb[0].mxu0
    %413 = vmatprep.mubr.f32.mxu0 0.0
    %414 = vmatmul.mubr.f32.gmra.mrb[0].mxu0 %v342
    %v415 = vpop.f32.mrb[0].mxu0
    %v416 = vadd.f32 %v336, %v415
    %v417 = vpop.f32.mrb[0].mxu0
    %418 = vdwg.mxu0
    %v419 = vmul.f32 %v416, 0.5
    %v420 = vmul.f32 %v419, 1.442695
    %v421 = vpow.pop %v420
    %v422 = vmul.f32 %v421, %v47
    %v423 = vadd.f32 %v411, %v422
    %v424 = vld [vmem:[%s7] sm:$0xff]
    %v425 = vld [vmem:[%s7 + $0x8] sm:$0xff]
    %v426 = vld [vmem:[%s7 + $0x10] sm:$0xff]
    %v427 = vld [vmem:[%s7 + $0x18] sm:$0xff]
    %v428 = vld [vmem:[%s8] sm:$0xff]
    %v429 = vld [vmem:[%s8 + $0x8] sm:$0xff]
    %v430 = vld [vmem:[%s8 + $0x10] sm:$0xff]
    %v431 = vld [vmem:[%s8 + $0x18] sm:$0xff]
    %433 = vset.pattern.permute.xlu0 0
    %434 = vperm.xlu0 %433, %v428
    %v435 = vpop.permute.xlu0 %434
    %438 = vset.pattern.permute.xlu0 0
    %439 = vperm.xlu0 %438, %v429
    %v440 = vpop.permute.xlu0 %439
    %443 = vset.pattern.permute.xlu0 0
    %444 = vperm.xlu0 %443, %v430
    %v445 = vpop.permute.xlu0 %444
    %448 = vset.pattern.permute.xlu0 0
    %449 = vperm.xlu0 %448, %v431
    %v450 = vpop.permute.xlu0 %449
    %vm452 = vcmask 64512
    %v454 = vsel %vm452, %v424, 0
    %v457 = vsel %vm452, %v425, 0
    %v460 = vsel %vm452, %v426, 0
    %v463 = vsel %vm452, %v427, 0
    %465 = vmatprep.subr.mxu0 0.0
    %466 = vmatpush1.msra.mxu0 %v423
    %467 = vmatprep.subr.mxu0 0.0
    %468 = vmatpush1.msra.mxu0 0.0
    %469 = vmatprep.subr.mxu0 0.0
    %470 = vmatpush1.msra.mxu0 0.0
    %471 = vmatprep.subr.mxu0 0.0
    %472 = vmatpush1.msra.mxu0 0.0
    %473 = vmatprep.subr.mxu0 0.0
    %474 = vmatpush1.msra.mxu0 0.0
    %475 = vmatprep.subr.mxu0 0.0
    %476 = vmatpush1.msra.mxu0 0.0
    %477 = vmatprep.subr.mxu0 0.0
    %478 = vmatpush1.msra.mxu0 0.0
    %479 = vmatprep.subr.mxu0 0.0
    %480 = vmatpush1.msra.mxu0 0.0
    %481 = vmatprep.subr.mxu0 0.0
    %482 = vmatpush1.msra.mxu0 0.0
    %483 = vmatprep.subr.mxu0 0.0
    %484 = vmatpush1.msra.mxu0 0.0
    %485 = vmatprep.subr.mxu0 0.0
    %486 = vmatpush1.msra.mxu0 0.0
    %487 = vmatprep.subr.mxu0 0.0
    %488 = vmatpush1.msra.mxu0 0.0
    %489 = vmatprep.subr.mxu0 0.0
    %490 = vmatpush1.msra.mxu0 0.0
    %491 = vmatprep.subr.mxu0 0.0
    %492 = vmatpush1.msra.mxu0 0.0
    %493 = vmatprep.subr.mxu0 0.0
    %494 = vmatpush1.msra.mxu0 0.0
    %495 = vmatprep.subr.mxu0 0.0
    %496 = vmatpush1.msra.mxu0 0.0
    %497 = vmatprep.subr.mxu0 0.0
    %498 = vmatpush1.msra.mxu0 0.0
    %499 = vmatprep.subr.mxu0 0.0
    %500 = vmatpush1.msra.mxu0 0.0
    %501 = vmatprep.subr.mxu0 0.0
    %502 = vmatpush1.msra.mxu0 0.0
    %503 = vmatprep.subr.mxu0 0.0
    %504 = vmatpush1.msra.mxu0 0.0
    %505 = vmatprep.subr.mxu0 0.0
    %506 = vmatpush1.msra.mxu0 0.0
    %507 = vmatprep.subr.mxu0 0.0
    %508 = vmatpush1.msra.mxu0 0.0
    %509 = vmatprep.subr.mxu0 0.0
    %510 = vmatpush1.msra.mxu0 0.0
    %511 = vmatprep.subr.mxu0 0.0
    %512 = vmatpush1.msra.mxu0 0.0
    %513 = vmatprep.subr.mxu0 0.0
    %514 = vmatpush1.msra.mxu0 0.0
    %515 = vmatprep.subr.mxu0 0.0
    %516 = vmatpush1.msra.mxu0 0.0
    %517 = vmatprep.subr.mxu0 0.0
    %518 = vmatpush1.msra.mxu0 0.0
    %519 = vmatprep.subr.mxu0 0.0
    %520 = vmatpush1.msra.mxu0 0.0
    %521 = vmatprep.subr.mxu0 0.0
    %522 = vmatpush1.msra.mxu0 0.0
    %523 = vmatprep.subr.mxu0 0.0
    %524 = vmatpush1.msra.mxu0 0.0
    %525 = vmatprep.subr.mxu0 0.0
    %526 = vmatpush1.msra.mxu0 0.0
    %527 = vmatprep.subr.mxu0 0.0
    %528 = vmatpush1.msra.mxu0 0.0
    %529 = vmatprep.mubr.f32.mxu0 0.0
    %530 = vmatmul.mubr.f32.gmra.mrb[0].mxu0 %v454
    %v531 = vpop.f32.mrb[0].mxu0
    %v532 = vadd.f32 %v435, %v531
    %v533 = vpop.f32.mrb[0].mxu0
    %534 = vmatprep.mubr.f32.mxu0 0.0
    %535 = vmatmul.mubr.f32.gmra.mrb[0].mxu0 %v457
    %v536 = vpop.f32.mrb[0].mxu0
    %v537 = vadd.f32 %v440, %v536
    %v538 = vpop.f32.mrb[0].mxu0
    %539 = vmatprep.mubr.f32.mxu0 0.0
    %540 = vmatmul.mubr.f32.gmra.mrb[0].mxu0 %v460
    %v541 = vpop.f32.mrb[0].mxu0
    %v542 = vadd.f32 %v445, %v541
    %v543 = vpop.f32.mrb[0].mxu0
    %544 = vmatprep.mubr.f32.mxu0 0.0
    %545 = vmatmul.mubr.f32.gmra.mrb[0].mxu0 %v463
    %v546 = vpop.f32.mrb[0].mxu0
    %v547 = vadd.f32 %v450, %v546
    %v548 = vpop.f32.mrb[0].mxu0
    %549 = vdwg.mxu0
    %vm550 = vcmp.ge.f32.partialorder %v532, 0.0
    %vm551 = vcmp.ge.f32.partialorder %v537, 0.0
    %vm552 = vcmp.ge.f32.partialorder %v542, 0.0
    %vm553 = vcmp.ge.f32.partialorder %v547, 0.0
    %v554 = vmul.f32 %v532, 0.2
    %v555 = vmul.f32 %v537, 0.2
    %v556 = vmul.f32 %v542, 0.2
    %v557 = vmul.f32 %v547, 0.2
    %v558 = vsel %vm550, %v532, %v554
    %v559 = vsel %vm551, %v537, %v555
    %v560 = vsel %vm552, %v542, %v556
    %v561 = vsel %vm553, %v547, %v557
    %v562 = vld [vmem:[%s9] sm:$0xff]
    %v563 = vld [vmem:[%s9 + $0x8] sm:$0xff]
    %v564 = vld [vmem:[%s9 + $0x10] sm:$0xff]
    %v565 = vld [vmem:[%s9 + $0x18] sm:$0xff]
    %v566 = vld [vmem:[%s10] sm:$0xff]
    %v567 = vld [vmem:[%s10 + $0x8] sm:$0xff]
    %v568 = vld [vmem:[%s10 + $0x10] sm:$0xff]
    %v569 = vld [vmem:[%s10 + $0x18] sm:$0xff]
    %571 = vset.pattern.permute.xlu0 0
    %572 = vperm.xlu0 %571, %v566
    %v573 = vpop.permute.xlu0 %572
    %576 = vset.pattern.permute.xlu0 0
    %577 = vperm.xlu0 %576, %v567
    %v578 = vpop.permute.xlu0 %577
    %581 = vset.pattern.permute.xlu0 0
    %582 = vperm.xlu0 %581, %v568
    %v583 = vpop.permute.xlu0 %582
    %586 = vset.pattern.permute.xlu0 0
    %587 = vperm.xlu0 %586, %v569
    %v588 = vpop.permute.xlu0 %587
    %v591 = vsel %vm214, %v562, 0
    %v594 = vsel %vm214, %v563, 0
    %v597 = vsel %vm214, %v564, 0
    %v600 = vsel %vm214, %v565, 0
    %602 = vmatprep.subr.mxu0 0.0
    %603 = vmatpush1.msra.mxu0 %v558
    %604 = vmatprep.subr.mxu0 0.0
    %605 = vmatpush1.msra.mxu0 %v559
    %606 = vmatprep.subr.mxu0 0.0
    %607 = vmatpush1.msra.mxu0 %v560
    %608 = vmatprep.subr.mxu0 0.0
    %609 = vmatpush1.msra.mxu0 %v561
    %610 = vmatprep.subr.mxu0 0.0
    %611 = vmatpush1.msra.mxu0 0.0
    %612 = vmatprep.subr.mxu0 0.0
    %613 = vmatpush1.msra.mxu0 0.0
    %614 = vmatprep.subr.mxu0 0.0
    %615 = vmatpush1.msra.mxu0 0.0
    %616 = vmatprep.subr.mxu0 0.0
    %617 = vmatpush1.msra.mxu0 0.0
    %618 = vmatprep.subr.mxu0 0.0
    %619 = vmatpush1.msra.mxu0 0.0
    %620 = vmatprep.subr.mxu0 0.0
    %621 = vmatpush1.msra.mxu0 0.0
    %622 = vmatprep.subr.mxu0 0.0
    %623 = vmatpush1.msra.mxu0 0.0
    %624 = vmatprep.subr.mxu0 0.0
    %625 = vmatpush1.msra.mxu0 0.0
    %626 = vmatprep.subr.mxu0 0.0
    %627 = vmatpush1.msra.mxu0 0.0
    %628 = vmatprep.subr.mxu0 0.0
    %629 = vmatpush1.msra.mxu0 0.0
    %630 = vmatprep.subr.mxu0 0.0
    %631 = vmatpush1.msra.mxu0 0.0
    %632 = vmatprep.subr.mxu0 0.0
    %633 = vmatpush1.msra.mxu0 0.0
    %634 = vmatprep.subr.mxu0 0.0
    %635 = vmatpush1.msra.mxu0 0.0
    %636 = vmatprep.subr.mxu0 0.0
    %637 = vmatpush1.msra.mxu0 0.0
    %638 = vmatprep.subr.mxu0 0.0
    %639 = vmatpush1.msra.mxu0 0.0
    %640 = vmatprep.subr.mxu0 0.0
    %641 = vmatpush1.msra.mxu0 0.0
    %642 = vmatprep.subr.mxu0 0.0
    %643 = vmatpush1.msra.mxu0 0.0
    %644 = vmatprep.subr.mxu0 0.0
    %645 = vmatpush1.msra.mxu0 0.0
    %646 = vmatprep.subr.mxu0 0.0
    %647 = vmatpush1.msra.mxu0 0.0
    %648 = vmatprep.subr.mxu0 0.0
    %649 = vmatpush1.msra.mxu0 0.0
    %650 = vmatprep.subr.mxu0 0.0
    %651 = vmatpush1.msra.mxu0 0.0
    %652 = vmatprep.subr.mxu0 0.0
    %653 = vmatpush1.msra.mxu0 0.0
    %654 = vmatprep.subr.mxu0 0.0
    %655 = vmatpush1.msra.mxu0 0.0
    %656 = vmatprep.subr.mxu0 0.0
    %657 = vmatpush1.msra.mxu0 0.0
    %658 = vmatprep.subr.mxu0 0.0
    %659 = vmatpush1.msra.mxu0 0.0
    %660 = vmatprep.subr.mxu0 0.0
    %661 = vmatpush1.msra.mxu0 0.0
    %662 = vmatprep.subr.mxu0 0.0
    %663 = vmatpush1.msra.mxu0 0.0
    %664 = vmatprep.subr.mxu0 0.0
    %665 = vmatpush1.msra.mxu0 0.0
    %666 = vmatprep.mubr.f32.mxu0 0.0
    %667 = vmatmul.mubr.f32.gmra.mrb[0].mxu0 %v591
    %v668 = vpop.f32.mrb[0].mxu0
    %v669 = vadd.f32 %v573, %v668
    %v670 = vpop.f32.mrb[0].mxu0
    %671 = vmatprep.mubr.f32.mxu0 0.0
    %672 = vmatmul.mubr.f32.gmra.mrb[0].mxu0 %v594
    %v673 = vpop.f32.mrb[0].mxu0
    %v674 = vadd.f32 %v578, %v673
    %v675 = vpop.f32.mrb[0].mxu0
    %676 = vmatprep.mubr.f32.mxu0 0.0
    %677 = vmatmul.mubr.f32.gmra.mrb[0].mxu0 %v597
    %v678 = vpop.f32.mrb[0].mxu0
    %v679 = vadd.f32 %v583, %v678
    %v680 = vpop.f32.mrb[0].mxu0
    %681 = vmatprep.mubr.f32.mxu0 0.0
    %682 = vmatmul.mubr.f32.gmra.mrb[0].mxu0 %v600
    %v683 = vpop.f32.mrb[0].mxu0
    %v684 = vadd.f32 %v588, %v683
    %v685 = vpop.f32.mrb[0].mxu0
    %686 = vdwg.mxu0
    %vm687 = vcmp.ge.f32.partialorder %v669, 0.0
    %vm688 = vcmp.ge.f32.partialorder %v674, 0.0
    %vm689 = vcmp.ge.f32.partialorder %v679, 0.0
    %vm690 = vcmp.ge.f32.partialorder %v684, 0.0
    %v691 = vmul.f32 %v669, 0.2
    %v692 = vmul.f32 %v674, 0.2
    %v693 = vmul.f32 %v679, 0.2
    %v694 = vmul.f32 %v684, 0.2
    %v695 = vsel %vm687, %v669, %v691
    %v696 = vsel %vm688, %v674, %v692
    %v697 = vsel %vm689, %v679, %v693
    %v698 = vsel %vm690, %v684, %v694
    %v699 = vld [vmem:[%s11] sm:$0xff]
    %v700 = vld [vmem:[%s11 + $0x8] sm:$0xff]
    %v701 = vld [vmem:[%s12] sm:$0xff]
    %v702 = vld [vmem:[%s12 + $0x8] sm:$0xff]
    %704 = vset.pattern.permute.xlu0 0
    %705 = vperm.xlu0 %704, %v701
    %v706 = vpop.permute.xlu0 %705
    %709 = vset.pattern.permute.xlu0 0
    %710 = vperm.xlu0 %709, %v702
    %v711 = vpop.permute.xlu0 %710
    %v714 = vsel %vm214, %v699, 0
    %v717 = vsel %vm214, %v700, 0
    %719 = vmatprep.subr.mxu0 0.0
    %720 = vmatpush1.msra.mxu0 %v695
    %721 = vmatprep.subr.mxu0 0.0
    %722 = vmatpush1.msra.mxu0 %v696
    %723 = vmatprep.subr.mxu0 0.0
    %724 = vmatpush1.msra.mxu0 %v697
    %725 = vmatprep.subr.mxu0 0.0
    %726 = vmatpush1.msra.mxu0 %v698
    %727 = vmatprep.subr.mxu0 0.0
    %728 = vmatpush1.msra.mxu0 0.0
    %729 = vmatprep.subr.mxu0 0.0
    %730 = vmatpush1.msra.mxu0 0.0
    %731 = vmatprep.subr.mxu0 0.0
    %732 = vmatpush1.msra.mxu0 0.0
    %733 = vmatprep.subr.mxu0 0.0
    %734 = vmatpush1.msra.mxu0 0.0
    %735 = vmatprep.subr.mxu0 0.0
    %736 = vmatpush1.msra.mxu0 0.0
    %737 = vmatprep.subr.mxu0 0.0
    %738 = vmatpush1.msra.mxu0 0.0
    %739 = vmatprep.subr.mxu0 0.0
    %740 = vmatpush1.msra.mxu0 0.0
    %741 = vmatprep.subr.mxu0 0.0
    %742 = vmatpush1.msra.mxu0 0.0
    %743 = vmatprep.subr.mxu0 0.0
    %744 = vmatpush1.msra.mxu0 0.0
    %745 = vmatprep.subr.mxu0 0.0
    %746 = vmatpush1.msra.mxu0 0.0
    %747 = vmatprep.subr.mxu0 0.0
    %748 = vmatpush1.msra.mxu0 0.0
    %749 = vmatprep.subr.mxu0 0.0
    %750 = vmatpush1.msra.mxu0 0.0
    %751 = vmatprep.subr.mxu0 0.0
    %752 = vmatpush1.msra.mxu0 0.0
    %753 = vmatprep.subr.mxu0 0.0
    %754 = vmatpush1.msra.mxu0 0.0
    %755 = vmatprep.subr.mxu0 0.0
    %756 = vmatpush1.msra.mxu0 0.0
    %757 = vmatprep.subr.mxu0 0.0
    %758 = vmatpush1.msra.mxu0 0.0
    %759 = vmatprep.subr.mxu0 0.0
    %760 = vmatpush1.msra.mxu0 0.0
    %761 = vmatprep.subr.mxu0 0.0
    %762 = vmatpush1.msra.mxu0 0.0
    %763 = vmatprep.subr.mxu0 0.0
    %764 = vmatpush1.msra.mxu0 0.0
    %765 = vmatprep.subr.mxu0 0.0
    %766 = vmatpush1.msra.mxu0 0.0
    %767 = vmatprep.subr.mxu0 0.0
    %768 = vmatpush1.msra.mxu0 0.0
    %769 = vmatprep.subr.mxu0 0.0
    %770 = vmatpush1.msra.mxu0 0.0
    %771 = vmatprep.subr.mxu0 0.0
    %772 = vmatpush1.msra.mxu0 0.0
    %773 = vmatprep.subr.mxu0 0.0
    %774 = vmatpush1.msra.mxu0 0.0
    %775 = vmatprep.subr.mxu0 0.0
    %776 = vmatpush1.msra.mxu0 0.0
    %777 = vmatprep.subr.mxu0 0.0
    %778 = vmatpush1.msra.mxu0 0.0
    %779 = vmatprep.subr.mxu0 0.0
    %780 = vmatpush1.msra.mxu0 0.0
    %781 = vmatprep.subr.mxu0 0.0
    %782 = vmatpush1.msra.mxu0 0.0
    %783 = vmatprep.mubr.f32.mxu0 0.0
    %784 = vmatmul.mubr.f32.gmra.mrb[0].mxu0 %v714
    %v785 = vpop.f32.mrb[0].mxu0
    %v786 = vadd.f32 %v706, %v785
    %v787 = vpop.f32.mrb[0].mxu0
    %788 = vmatprep.mubr.f32.mxu0 0.0
    %789 = vmatmul.mubr.f32.gmra.mrb[0].mxu0 %v717
    %v790 = vpop.f32.mrb[0].mxu0
    %v791 = vadd.f32 %v711, %v790
    %v792 = vpop.f32.mrb[0].mxu0
    %793 = vdwg.mxu0
    %794 = vst [vmem:[#allocation2] sm:$0xff] %v786
    %795 = vst [vmem:[#allocation2 + $0x8] sm:$0xff] %v791
    %796 = vst [vmem:[#allocation2 + $0x10] sm:$0xff] %v411
    %797 = vst [vmem:[#allocation2 + $0x18] sm:$0xff] %v416
    // Predicated region
    $region54: #{tpu_custom_call.1} parent=1 // pred_check
      _
    $region55: #{tpu_custom_call.1} parent=1 // pred_check_branch
      %799 = sbr.rel (0) target = $region57
    $region56: #{tpu_custom_call.1} parent=1 // pred_region
      %s801 = ssub.s32 512, 512
      %802 = vsyncadd [#allocation3], %s801
      %s803 = sshll.u32 [#allocation2], 4
      %s804 = int_to_ptr.vmem [resolvable:$true] %s803
      %809 = dma.vmem_to_hbm [thread:$0]  %s804, 512, %s13, [#allocation3], 128, 128, 8
    $region57: #{tpu_custom_call.1} parent=1 // pred_fallthru
      _
    // Predicated region
    $region58: #{tpu_custom_call.1} parent=1 // pred_check
      _
    $region59: #{tpu_custom_call.1} parent=1 // pred_check_branch
      %811 = sbr.rel (0) target = $region61
    $region60: #{tpu_custom_call.1} parent=1 // pred_region
      %812 = dma.done [#allocation3], 512
    $region61: #{tpu_custom_call.1} parent=1 // pred_fallthru
      _
    %813 = vsyncpa [#allocation3], 1

</llo_original>
